<compile_context>
chip_gen: v6e
topology: v6e:2x2x1
jax: 0.10.0
libtpu: 0.0.40
codegen_flags: <defaults>
</compile_context>

<pallas_src>
import jax
import jax.numpy as jnp
from jax.experimental import pallas as pl
from jax.experimental.pallas import tpu as pltpu


# ---------------------------------------------------------------------------
# Pallas kernel: one fused matmul, merged conv folded into the weight rows
# ---------------------------------------------------------------------------
def _conv_merged_kernel(w_ref, p_ref, out_ref):
    # w_ref:   (8, K)   rows 0..2 = disentangled conv weights (flattened OIHW),
    #                   row 3 = w0 + w1 - w2 (folded merge conv), rows 4..7 = 0.
    # p_ref:   (K, L)   transposed im2col patches, L = N*OH*OW padded to %128.
    # out_ref: (8, L)   single unmasked full-tile store.
    out_ref[...] = jnp.dot(
        w_ref[...], p_ref[...], preferred_element_type=jnp.float32)


def _pallas_conv_merged(w8, patchesT):
    """w8: (8, K) f32, patchesT: (K, L) f32 -> (8, L) f32.  Single grid step."""
    co8, k = w8.shape
    _, lanes = patchesT.shape
    cost = pl.CostEstimate(
        flops=2 * co8 * k * lanes,
        transcendentals=0,
        bytes_accessed=4 * (k * lanes + co8 * k + co8 * lanes),
    )
    return pl.pallas_call(
        _conv_merged_kernel,
        out_shape=jax.ShapeDtypeStruct((co8, lanes), jnp.float32),
        grid_spec=pltpu.PrefetchScalarGridSpec(
            num_scalar_prefetch=0,
            grid=(1,),
            in_specs=[
                pl.BlockSpec((co8, k), lambda i: (0, 0)),
                pl.BlockSpec((k, lanes), lambda i: (0, 0)),
            ],
            out_specs=pl.BlockSpec((co8, lanes), lambda i: (0, 0)),
        ),
        compiler_params=pltpu.CompilerParams(
            dimension_semantics=("arbitrary",),
        ),
        cost_estimate=cost,
    )(w8, patchesT)


# ---------------------------------------------------------------------------
# Glue: transposed im2col, batch fused onto the lane axis, lane-padded to 128
# ---------------------------------------------------------------------------
def _im2col_transposed_flat(x_nchw, kh, kw, stride, padding):
    """x (N, C, H, W) -> patchesT (C*KH*KW, N*OH*OW), K ordered (c, kh, kw)."""
    if padding > 0:
        x_nchw = jnp.pad(
            x_nchw, ((0, 0), (0, 0), (padding, padding), (padding, padding)))
    n, c, h, w = x_nchw.shape
    oh = (h - kh) // stride + 1
    ow = (w - kw) // stride + 1
    # One wrapper-side transpose so K lands on sublanes and N*OH*OW on lanes.
    x_cnhw = jnp.transpose(x_nchw, (1, 0, 2, 3))          # (C, N, H, W)
    slabs = []
    for i in range(kh):
        for j in range(kw):
            slabs.append(
                x_cnhw[:, :, i:i + stride * oh:stride, j:j + stride * ow:stride])
    # (C, KH*KW, N, OH, OW) -> (C*KH*KW, N*OH*OW); K index = c*KH*KW + kh*KW + kw
    patchesT = jnp.stack(slabs, axis=1).reshape(c * kh * kw, n * oh * ow)
    return patchesT, oh, ow


def training_model_forward(x_nchw, w_disentangled, stride, padding):
    """Forward pass equivalent to TrainingModel.forward.

    x_nchw:          (N, C_in, H, W)   float32
    w_disentangled:  (3, C_in, KH, KW) float32 (PyTorch Conv2d OIHW layout)
    Returns (merged (N, 1, OH, OW), disentangled (N, 3, OH, OW)).
    """
    n = x_nchw.shape[0]
    c_out, c_in, kh, kw = w_disentangled.shape   # c_out == 3
    k = c_in * kh * kw

    patchesT, oh, ow = _im2col_transposed_flat(
        x_nchw.astype(jnp.float32), kh, kw, stride, padding)
    ohw_total = n * oh * ow

    # Pad the lane axis to a multiple of 128 (lane-dense loads/stores).
    lanes = ((ohw_total + 127) // 128) * 128
    if lanes != ohw_total:
        patchesT = jnp.pad(patchesT, ((0, 0), (0, lanes - ohw_total)))

    # OIHW reshape gives K order (c, kh, kw) matching the patches.
    w_flat = w_disentangled.astype(jnp.float32).reshape(c_out, k)   # (3, K)
    w_merged_row = (w_flat[0:1] + w_flat[1:2] - w_flat[2:3])        # (1, K)
    # Rows: 0..2 disentangled, 3 merged fold, 4..7 zero fill (8-sublane tile).
    w8 = jnp.concatenate(
        [w_flat, w_merged_row, jnp.zeros((4, k), jnp.float32)], axis=0)

    out = _pallas_conv_merged(w8, patchesT)               # (8, lanes)
    out = out[:c_out + 1, :ohw_total]                     # (4, N*OH*OW)
    out = out.reshape(c_out + 1, n, oh, ow)
    out = jnp.transpose(out, (1, 0, 2, 3))                # (N, 4, OH, OW)
    disentangled = out[:, :c_out]                         # (N, 3, OH, OW)
    merged = out[:, c_out:c_out + 1]                      # (N, 1, OH, OW)
    return merged, disentangled


# ---------------------------------------------------------------------------
# Main
# ---------------------------------------------------------------------------
if __name__ == "__main__":
    # Module hyper-parameters (synthetic, deterministic).
    channel_of_interest = 0           # unused in forward()
    input_channels = 4
    kernel_size = 3
    stride = 1
    padding = 0

    key = jax.random.PRNGKey(0)
    kx, kw_key = jax.random.split(key)

    # Input: NCHW, matching PyTorch conv convention.
    x = jax.random.normal(kx, (2, input_channels, 16, 16), dtype=jnp.float32)
    # Disentangled conv weight: (out=3, in=C, KH, KW), deterministic init.
    w_dis = jax.random.normal(
        kw_key, (3, input_channels, kernel_size, kernel_size), dtype=jnp.float32
    ) * 0.1
    # Merged conv weight is fixed to [1, 1, -1] (folded into the weight matrix).

    fwd = jax.jit(training_model_forward, static_argnames=("stride", "padding"))
    merged, disentangled = fwd(x, w_dis, stride=stride, padding=padding)
    merged = jax.block_until_ready(merged)
    disentangled = jax.block_until_ready(disentangled)

    # Cross-check against XLA's convolution (reference semantics of the module).
    dis_ref = jax.lax.conv_general_dilated(
        x, w_dis, window_strides=(stride, stride),
        padding=[(padding, padding), (padding, padding)],
        dimension_numbers=("NCHW", "OIHW", "NCHW"),
    )
    w_merged = jnp.array([1.0, 1.0, -1.0], jnp.float32).reshape(1, 3, 1, 1)
    mrg_ref = jax.lax.conv_general_dilated(
        dis_ref, w_merged, window_strides=(1, 1), padding=[(0, 0), (0, 0)],
        dimension_numbers=("NCHW", "OIHW", "NCHW"),
    )
    assert disentangled.shape == (2, 3, 14, 14)
    assert merged.shape == (2, 1, 14, 14)
    assert jnp.allclose(disentangled, dis_ref, atol=1e-4, rtol=1e-4)
    assert jnp.allclose(merged, mrg_ref, atol=1e-4, rtol=1e-4)

    print("KERNEL_OK")
</pallas_src>

<mosaic_0001>
module attributes {stable_mosaic.version = 11 : i64} {
  func.func @_conv_merged_kernel(%arg0: i32, %arg1: memref<8x36xf32, #tpu.memory_space<vmem>>, %arg2: memref<36x512xf32, #tpu.memory_space<vmem>>, %arg3: memref<8x512xf32, #tpu.memory_space<vmem>>) attributes {dimension_semantics = [#tpu.dimension_semantics<arbitrary>], iteration_bounds = array<i64: 1>, scalar_prefetch = 0 : i64, scratch_operands = 0 : i64, tpu.core_type = #tpu.core_type<tc>, window_params = [{pipeline_mode = #tpu.pipeline_mode<synchronous>, transform_indices = @transform_0, window_bounds = array<i64: 8, 36>}, {pipeline_mode = #tpu.pipeline_mode<synchronous>, transform_indices = @transform_1, window_bounds = array<i64: 36, 512>}, {pipeline_mode = #tpu.pipeline_mode<synchronous>, transform_indices = @transform_2, window_bounds = array<i64: 8, 512>}]} {
    %c0 = arith.constant 0 : index
    %c0_0 = arith.constant 0 : index
    %0 = vector.load %arg1[%c0, %c0_0] : memref<8x36xf32, #tpu.memory_space<vmem>>, vector<8x36xf32>
    %c0_1 = arith.constant 0 : index
    %c0_2 = arith.constant 0 : index
    %1 = vector.load %arg2[%c0_1, %c0_2] : memref<36x512xf32, #tpu.memory_space<vmem>>, vector<36x512xf32>
    %cst = arith.constant dense<0.000000e+00> : vector<8x512xf32>
    %2 = tpu.matmul %0, %1, %cst {dimension_numbers = #tpu.dot_dimension_numbers<[1], [0], [0], [1], [0, 0, 1, 1], [], []>} : vector<8x36xf32>, vector<36x512xf32>, vector<8x512xf32> -> vector<8x512xf32>
    %c0_3 = arith.constant 0 : index
    %c0_4 = arith.constant 0 : index
    %3 = vector.load %arg3[%c0_3, %c0_4] : memref<8x512xf32, #tpu.memory_space<vmem>>, vector<8x512xf32>
    tpu.vector_store %arg3[%c0_3, %c0_4], %2 {strides = array<i32>} : memref<8x512xf32, #tpu.memory_space<vmem>>, vector<8x512xf32>,
    return
  }
  func.func @transform_0(%arg0: i32) -> (i32, i32) {
    %c0_i32 = arith.constant 0 : i32
    %c0_i32_0 = arith.constant 0 : i32
    %c0_i32_1 = arith.constant 0 : i32
    return %c0_i32, %c0_i32_0 : i32, i32
  }
  func.func @transform_1(%arg0: i32) -> (i32, i32) {
    %c0_i32 = arith.constant 0 : i32
    %c0_i32_0 = arith.constant 0 : i32
    %c0_i32_1 = arith.constant 0 : i32
    return %c0_i32, %c0_i32_0 : i32, i32
  }
  func.func @transform_2(%arg0: i32) -> (i32, i32) {
    %c0_i32 = arith.constant 0 : i32
    %c0_i32_0 = arith.constant 0 : i32
    %c0_i32_1 = arith.constant 0 : i32
    return %c0_i32, %c0_i32_0 : i32, i32
  }
}

</mosaic_0001>

<llo_original>
// kernel: training_model_forward.1
$region0: #{training_model_forward.1}
  #allocation0 [shape = 'u32[]', space=smem, size = 0x4, offset = 0x4, fixed_abs, tag = 'smem constant byte address 0x4 - core index']
  #allocation1 [shape = 'u32[144,128]{1,0:T(1,128)}', space=vmem, size = 0x12000, scoped, tag = 'internal scratch']
  %s0 = inlined_call_operand.vmem [shape: f32[8,36], index: 0, kind: input, shape index: {}]
  %s1 = inlined_call_operand.vmem [shape: f32[36,512], index: 1, kind: input, shape index: {}]
  %s2 = inlined_call_operand.vmem [shape: f32[8,512], index: 2, kind: output, shape index: {}]
  %s3 = sld [smem:[#allocation0]]
  $region18: #{training_model_forward.1} parent=0
    _
  %s5 = ssub.s32 1, %s3
  %s6 = scalar_select 0, %s5, %s3
  // Predicated region
  $region2: #{training_model_forward.1} parent=0 // pred_check
    _
  $region3: #{training_model_forward.1} parent=0 // pred_check_branch
    %8 = sbr.rel (0) target = $region5
  $region4: #{training_model_forward.1} parent=0 // pred_region
    _
  $region5: #{training_model_forward.1} parent=0 // pred_fallthru
    _
  // Predicated region
  $region6: #{training_model_forward.1} parent=0 // pred_check
    _
  $region7: #{training_model_forward.1} parent=0 // pred_check_branch
    %10 = sbr.rel (0) target = $region9
  $region8: #{training_model_forward.1} parent=0 // pred_region
    _
  $region9: #{training_model_forward.1} parent=0 // pred_fallthru
    _
  %v11 = vld [vmem:[%s0] sm:$0xff]
  %v12 = vld [vmem:[%s1] sm:$0xff]
  %v13 = vld [vmem:[%s1 + $0x8] sm:$0xff]
  %v14 = vld [vmem:[%s1 + $0x10] sm:$0xff]
  %v15 = vld [vmem:[%s1 + $0x18] sm:$0xff]
  %v16 = vld [vmem:[%s1 + $0x20] sm:$0xff]
  %v17 = vld [vmem:[%s1 + $0x28] sm:$0xff]
  %v18 = vld [vmem:[%s1 + $0x30] sm:$0xff]
  %v19 = vld [vmem:[%s1 + $0x38] sm:$0xff]
  %v20 = vld [vmem:[%s1 + $0x40] sm:$0xff]
  %v21 = vld [vmem:[%s1 + $0x48] sm:$0xff]
  %v22 = vld [vmem:[%s1 + $0x50] sm:$0xff]
  %v23 = vld [vmem:[%s1 + $0x58] sm:$0xff]
  %v24 = vld [vmem:[%s1 + $0x60] sm:$0xff]
  %v25 = vld [vmem:[%s1 + $0x68] sm:$0xff]
  %v26 = vld [vmem:[%s1 + $0x70] sm:$0xff]
  %v27 = vld [vmem:[%s1 + $0x78] sm:$0xff]
  %v28 = vld [vmem:[%s1 + $0x80] sm:$0xf]
  %v29 = vld [vmem:[%s1 + $0x88] sm:$0xf]
  %v30 = vld [vmem:[%s1 + $0x90] sm:$0xf]
  %v31 = vld [vmem:[%s1 + $0x98] sm:$0xf]
  %vm32 = vcmask 293888
  %v34 = vsel %vm32, %v11, 0
  %vm36 = vcmask 1043456
  %v38 = vsel %vm36, %v28, 0
  %v41 = vsel %vm36, %v29, 0
  %v44 = vsel %vm36, %v30, 0
  %v47 = vsel %vm36, %v31, 0
  %49 = vmatprep.subr.mxu0 0.0
  %50 = vmatpush1.msra.mxu0 0.0
  %51 = vmatprep.subr.mxu0 0.0
  %52 = vmatpush1.msra.mxu0 0.0
  %53 = vmatprep.subr.mxu0 0.0
  %54 = vmatpush1.msra.mxu0 0.0
  %55 = vmatprep.subr.mxu0 0.0
  %56 = vmatpush1.msra.mxu0 0.0
  %57 = vmatprep.subr.mxu0 0.0
  %58 = vmatpush1.msra.mxu0 0.0
  %59 = vmatprep.subr.mxu0 0.0
  %60 = vmatpush1.msra.mxu0 0.0
  %61 = vmatprep.subr.mxu0 0.0
  %62 = vmatpush1.msra.mxu0 0.0
  %63 = vmatprep.subr.mxu0 0.0
  %64 = vmatpush1.msra.mxu0 0.0
  %65 = vmatprep.subr.mxu0 0.0
  %66 = vmatpush1.msra.mxu0 0.0
  %67 = vmatprep.subr.mxu0 0.0
  %68 = vmatpush1.msra.mxu0 0.0
  %69 = vmatprep.subr.mxu0 0.0
  %70 = vmatpush1.msra.mxu0 0.0
  %71 = vmatprep.subr.mxu0 %v41
  %72 = vmatpush1.msra.mxu0 %v38
  %73 = vmatprep.subr.mxu0 %v25
  %74 = vmatpush1.msra.mxu0 %v24
  %75 = vmatprep.subr.mxu0 %v21
  %76 = vmatpush1.msra.mxu0 %v20
  %77 = vmatprep.subr.mxu0 %v17
  %78 = vmatpush1.msra.mxu0 %v16
  %79 = vmatprep.subr.mxu0 %v13
  %80 = vmatpush1.msra.mxu0 %v12
  %81 = vmatprep.subr.mxu0 0.0
  %82 = vmatpush2.msra.mxu0 0.0
  %83 = vmatprep.subr.mxu0 0.0
  %84 = vmatpush2.msra.mxu0 0.0
  %85 = vmatprep.subr.mxu0 0.0
  %86 = vmatpush2.msra.mxu0 0.0
  %87 = vmatprep.subr.mxu0 0.0
  %88 = vmatpush2.msra.mxu0 0.0
  %89 = vmatprep.subr.mxu0 0.0
  %90 = vmatpush2.msra.mxu0 0.0
  %91 = vmatprep.subr.mxu0 0.0
  %92 = vmatpush2.msra.mxu0 0.0
  %93 = vmatprep.subr.mxu0 0.0
  %94 = vmatpush2.msra.mxu0 0.0
  %95 = vmatprep.subr.mxu0 0.0
  %96 = vmatpush2.msra.mxu0 0.0
  %97 = vmatprep.subr.mxu0 0.0
  %98 = vmatpush2.msra.mxu0 0.0
  %99 = vmatprep.subr.mxu0 0.0
  %100 = vmatpush2.msra.mxu0 0.0
  %101 = vmatprep.subr.mxu0 0.0
  %102 = vmatpush2.msra.mxu0 0.0
  %103 = vmatprep.subr.mxu0 0.0
  %104 = vmatpush2.msra.mxu0 0.0
  %105 = vmatprep.subr.mxu0 0.0
  %106 = vmatpush2.msra.mxu0 0.0
  %107 = vmatprep.subr.mxu0 0.0
  %108 = vmatpush2.msra.mxu0 0.0
  %109 = vmatprep.subr.mxu0 0.0
  %110 = vmatpush2.msra.mxu0 0.0
  %111 = vmatprep.subr.mxu0 0.0
  %112 = vmatpush2.msra.mxu0 0.0
  %113 = vmatprep.mubr.f32.mxu0 0.0
  %114 = vmatmul.mubr.f32.gmra.mxu0 %v34
  %v115 = vpop.f32.mrf.mxu0
  %v116 = vadd.f32 0.0, %v115
  %v117 = vpop.f32.mrf.mxu0
  %v118 = vadd.f32 0.0, %v117
  %119 = vdwg.mxu0
  %120 = vmatprep.subr.mxu0 0.0
  %121 = vmatpush1.msra.mxu0 0.0
  %122 = vmatprep.subr.mxu0 0.0
  %123 = vmatpush1.msra.mxu0 0.0
  %124 = vmatprep.subr.mxu0 0.0
  %125 = vmatpush1.msra.mxu0 0.0
  %126 = vmatprep.subr.mxu0 0.0
  %127 = vmatpush1.msra.mxu0 0.0
  %128 = vmatprep.subr.mxu0 0.0
  %129 = vmatpush1.msra.mxu0 0.0
  %130 = vmatprep.subr.mxu0 0.0
  %131 = vmatpush1.msra.mxu0 0.0
  %132 = vmatprep.subr.mxu0 0.0
  %133 = vmatpush1.msra.mxu0 0.0
  %134 = vmatprep.subr.mxu0 0.0
  %135 = vmatpush1.msra.mxu0 0.0
  %136 = vmatprep.subr.mxu0 0.0
  %137 = vmatpush1.msra.mxu0 0.0
  %138 = vmatprep.subr.mxu0 0.0
  %139 = vmatpush1.msra.mxu0 0.0
  %140 = vmatprep.subr.mxu0 0.0
  %141 = vmatpush1.msra.mxu0 0.0
  %142 = vmatprep.subr.mxu0 %v47
  %143 = vmatpush1.msra.mxu0 %v44
  %144 = vmatprep.subr.mxu0 %v27
  %145 = vmatpush1.msra.mxu0 %v26
  %146 = vmatprep.subr.mxu0 %v23
  %147 = vmatpush1.msra.mxu0 %v22
  %148 = vmatprep.subr.mxu0 %v19
  %149 = vmatpush1.msra.mxu0 %v18
  %150 = vmatprep.subr.mxu0 %v15
  %151 = vmatpush1.msra.mxu0 %v14
  %152 = vmatprep.subr.mxu0 0.0
  %153 = vmatpush2.msra.mxu0 0.0
  %154 = vmatprep.subr.mxu0 0.0
  %155 = vmatpush2.msra.mxu0 0.0
  %156 = vmatprep.subr.mxu0 0.0
  %157 = vmatpush2.msra.mxu0 0.0
  %158 = vmatprep.subr.mxu0 0.0
  %159 = vmatpush2.msra.mxu0 0.0
  %160 = vmatprep.subr.mxu0 0.0
  %161 = vmatpush2.msra.mxu0 0.0
  %162 = vmatprep.subr.mxu0 0.0
  %163 = vmatpush2.msra.mxu0 0.0
  %164 = vmatprep.subr.mxu0 0.0
  %165 = vmatpush2.msra.mxu0 0.0
  %166 = vmatprep.subr.mxu0 0.0
  %167 = vmatpush2.msra.mxu0 0.0
  %168 = vmatprep.subr.mxu0 0.0
  %169 = vmatpush2.msra.mxu0 0.0
  %170 = vmatprep.subr.mxu0 0.0
  %171 = vmatpush2.msra.mxu0 0.0
  %172 = vmatprep.subr.mxu0 0.0
  %173 = vmatpush2.msra.mxu0 0.0
  %174 = vmatprep.subr.mxu0 0.0
  %175 = vmatpush2.msra.mxu0 0.0
  %176 = vmatprep.subr.mxu0 0.0
  %177 = vmatpush2.msra.mxu0 0.0
  %178 = vmatprep.subr.mxu0 0.0
  %179 = vmatpush2.msra.mxu0 0.0
  %180 = vmatprep.subr.mxu0 0.0
  %181 = vmatpush2.msra.mxu0 0.0
  %182 = vmatprep.subr.mxu0 0.0
  %183 = vmatpush2.msra.mxu0 0.0
  %184 = vmatprep.mubr.f32.mxu0 0.0
  %185 = vmatmul.mubr.f32.gmra.mxu0 %v34
  %v186 = vpop.f32.mrf.mxu0
  %v187 = vadd.f32 0.0, %v186
  %v188 = vpop.f32.mrf.mxu0
  %v189 = vadd.f32 0.0, %v188
  %190 = vdwg.mxu0
  %191 = vst [vmem:[%s2] sm:$0xff] %v116
  %192 = vst [vmem:[%s2 + $0x8] sm:$0xff] %v118
  %193 = vst [vmem:[%s2 + $0x10] sm:$0xff] %v187
  %194 = vst [vmem:[%s2 + $0x18] sm:$0xff] %v189
  // Predicated region
  $region10: #{training_model_forward.1} parent=0 // pred_check
    _
  $region11: #{training_model_forward.1} parent=0 // pred_check_branch
    %196 = sbr.rel (0) target = $region13
  $region12: #{training_model_forward.1} parent=0 // pred_region
    _
  $region13: #{training_model_forward.1} parent=0 // pred_fallthru
    _
  // Predicated region
  $region14: #{training_model_forward.1} parent=0 // pred_check
    _
  $region15: #{training_model_forward.1} parent=0 // pred_check_branch
    %198 = sbr.rel (0) target = $region17
  $region16: #{training_model_forward.1} parent=0 // pred_region
    _
  $region17: #{training_model_forward.1} parent=0 // pred_fallthru
    _

</llo_original>
